<compile_context>
chip_gen: v5e
topology: v5e:2x2
jax: 0.10.0
libtpu: 0.0.40
codegen_flags: <defaults>
</compile_context>

<pallas_src>
import math

import jax
import jax.numpy as jnp
from jax.experimental import pallas as pl
from jax.experimental.pallas import tpu as pltpu


# ----------------------------------------------------------------------------
# Kernel: broadcast add.  x tile (TB, TS, D), pe tile (TS, D).
# ----------------------------------------------------------------------------
def _add_pe_kernel(x_ref, pe_ref, o_ref):
    # (TB, TS, D) + (TS, D) broadcasts over the leading batch-tile dim.
    o_ref[...] = (x_ref[...] + pe_ref[...]).astype(o_ref.dtype)


# ----------------------------------------------------------------------------
# Tile-size heuristic (all values static Python ints).
# ----------------------------------------------------------------------------
def _choose_tiles(B, S, D, itemsize_x, itemsize_pe):
    target_tile = 2 << 20      # ~2 MiB per x tile (review: 1-4 MiB sweet spot)
    live_budget = 12 << 20     # total live double-buffered bytes (< v5e 16 MiB scoped)

    slab = S * D * itemsize_x  # one batch element's rows, in bytes
    if slab >= target_tile or B == 1:
        # Large-S path: tile the sequence axis, one batch element per step.
        tb = 1
        row_live = D * (4 * itemsize_x + 2 * itemsize_pe)  # x(2)+out(2)+pe(2) per row
        ts = live_budget // max(row_live, 1)
        ts = min(ts, 8192, S)
        if ts < S:
            ts = max(8, (ts // 8) * 8)  # (8, 128) rule: sublane dim multiple of 8
        return tb, ts
    else:
        # Small-S path: take the full sequence and span several batch elements
        # per grid step so each step still moves a reasonably large slab.
        ts = S
        tb = max(1, target_tile // max(slab, 1))
        tb = min(B, tb)
        while tb > 1 and 4 * tb * slab + 2 * S * D * itemsize_pe > live_budget:
            tb -= 1
        return tb, ts


def adaptive_multiscale_pe(x, pe_coarse, pe_detail, raw_alpha, detail_level=0.5):
    """x: (B, S, D); pe_*: (max_len, D) float32; raw_alpha: scalar/(1,) param."""
    B, S, D = x.shape
    assert S <= pe_coarse.shape[0] and S <= pe_detail.shape[0], "seq_len > max_len"

    # --- pre-blend the two PE tables into one (S, D) array (plain JAX, fused) ---
    alpha = jax.nn.sigmoid(jnp.asarray(raw_alpha, jnp.float32).reshape(()))
    pe = (alpha * pe_coarse[:S].astype(jnp.float32)
          + (1.0 - alpha) * jnp.float32(detail_level) * pe_detail[:S].astype(jnp.float32))
    # Cast to the activation dtype: halves pe DMA bytes for bf16 activations and
    # removes in-kernel promote/downcast.  Output stays in x.dtype (PyTorch with
    # f32 x matches exactly; bf16 x is rounded to bf16 by design).
    pe = pe.astype(x.dtype)

    itemsize_x = jnp.dtype(x.dtype).itemsize
    itemsize_pe = jnp.dtype(pe.dtype).itemsize
    TB, TS = _choose_tiles(B, S, D, itemsize_x, itemsize_pe)

    grid = (pl.cdiv(S, TS), pl.cdiv(B, TB))  # row tiles outer (slow), batch inner (fast)

    out = pl.pallas_call(
        _add_pe_kernel,
        out_shape=jax.ShapeDtypeStruct((B, S, D), x.dtype),
        grid=grid,
        in_specs=[
            # x tile: (TB, TS, D)
            pl.BlockSpec((TB, TS, D), lambda r, b: (b, r, 0)),
            # pe tile: (TS, D), block index depends only on the outer row axis,
            # so it is only re-fetched when the row tile changes.
            pl.BlockSpec((TS, D), lambda r, b: (r, 0)),
        ],
        out_specs=pl.BlockSpec((TB, TS, D), lambda r, b: (b, r, 0)),
        compiler_params=pltpu.CompilerParams(
            dimension_semantics=("parallel", "parallel"),
        ),
    )(x, pe)

    return out


# ----------------------------------------------------------------------------
# Deterministic buffer construction (mirrors the PyTorch __init__)
# ----------------------------------------------------------------------------
def make_pe_buffers(d_model, max_len):
    position = jnp.arange(max_len, dtype=jnp.float32)[:, None]               # (L, 1)
    div_term = jnp.exp(
        jnp.arange(0, d_model, 2, dtype=jnp.float32) * -(math.log(10000.0) / d_model)
    )                                                                         # (D/2,)

    def build(scale):
        ang = position * div_term * scale                                     # (L, D/2)
        pe = jnp.zeros((max_len, d_model), jnp.float32)
        pe = pe.at[:, 0::2].set(jnp.sin(ang))
        pe = pe.at[:, 1::2].set(jnp.cos(ang))
        return pe

    return build(10.0), build(1.0)   # pe_coarse, pe_detail


def reference_forward(x, pe_coarse, pe_detail, raw_alpha, detail_level=0.5):
    S = x.shape[1]
    alpha = jax.nn.sigmoid(jnp.asarray(raw_alpha, jnp.float32).reshape(()))
    adaptive_pe = alpha * pe_coarse[:S] + (1.0 - alpha) * pe_detail[:S] * detail_level
    return x + adaptive_pe[None, :, :]


if __name__ == "__main__":
    B, S, D = 2, 8, 32
    MAX_LEN = 64

    key = jax.random.PRNGKey(0)
    x = jax.random.normal(key, (B, S, D), dtype=jnp.float32)

    pe_coarse, pe_detail = make_pe_buffers(D, MAX_LEN)
    raw_alpha = jnp.zeros((1,), jnp.float32)   # nn.Parameter(torch.zeros(1))
    detail_level = 0.5

    out = adaptive_multiscale_pe(x, pe_coarse, pe_detail, raw_alpha, detail_level)
    out = jax.block_until_ready(out)

    ref = reference_forward(x, pe_coarse, pe_detail, raw_alpha, detail_level)
    assert out.shape == (B, S, D)
    assert jnp.allclose(out, ref.astype(out.dtype), atol=1e-5, rtol=1e-5), "mismatch vs reference"

    print("KERNEL_OK")
</pallas_src>

<mosaic_0001>
module attributes {stable_mosaic.version = 11 : i64} {
  func.func @_add_pe_kernel(%arg0: i32, %arg1: i32, %arg2: memref<2x8x32xf32, #tpu.memory_space<vmem>>, %arg3: memref<8x32xf32, #tpu.memory_space<vmem>>, %arg4: memref<2x8x32xf32, #tpu.memory_space<vmem>>) attributes {dimension_semantics = [#tpu.dimension_semantics<parallel>, #tpu.dimension_semantics<parallel>], iteration_bounds = array<i64: 1, 1>, scalar_prefetch = 0 : i64, scratch_operands = 0 : i64, tpu.core_type = #tpu.core_type<tc>, window_params = [{transform_indices = @transform_0, window_bounds = array<i64: 2, 8, 32>}, {transform_indices = @transform_1, window_bounds = array<i64: 8, 32>}, {transform_indices = @transform_2, window_bounds = array<i64: 2, 8, 32>}]} {
    %c0 = arith.constant 0 : index
    %c0_0 = arith.constant 0 : index
    %c0_1 = arith.constant 0 : index
    %0 = vector.load %arg2[%c0, %c0_0, %c0_1] : memref<2x8x32xf32, #tpu.memory_space<vmem>>, vector<2x8x32xf32>
    %c0_2 = arith.constant 0 : index
    %c0_3 = arith.constant 0 : index
    %1 = vector.load %arg3[%c0_2, %c0_3] : memref<8x32xf32, #tpu.memory_space<vmem>>, vector<8x32xf32>
    %2 = vector.shape_cast %1 : vector<8x32xf32> to vector<1x8x32xf32>
    %3 = vector.broadcast %2 : vector<1x8x32xf32> to vector<2x8x32xf32>
    %4 = arith.addf %0, %3 : vector<2x8x32xf32>
    %c0_4 = arith.constant 0 : index
    %c0_5 = arith.constant 0 : index
    %c0_6 = arith.constant 0 : index
    %5 = vector.load %arg4[%c0_4, %c0_5, %c0_6] : memref<2x8x32xf32, #tpu.memory_space<vmem>>, vector<2x8x32xf32>
    tpu.vector_store %arg4[%c0_4, %c0_5, %c0_6], %4 {strides = array<i32>} : memref<2x8x32xf32, #tpu.memory_space<vmem>>, vector<2x8x32xf32>,
    return
  }
  func.func @transform_0(%arg0: i32, %arg1: i32) -> (i32, i32, i32) {
    %c0_i32 = arith.constant 0 : i32
    %c0_i32_0 = arith.constant 0 : i32
    return %arg1, %arg0, %c0_i32 : i32, i32, i32
  }
  func.func @transform_1(%arg0: i32, %arg1: i32) -> (i32, i32) {
    %c0_i32 = arith.constant 0 : i32
    %c0_i32_0 = arith.constant 0 : i32
    return %arg0, %c0_i32 : i32, i32
  }
  func.func @transform_2(%arg0: i32, %arg1: i32) -> (i32, i32, i32) {
    %c0_i32 = arith.constant 0 : i32
    %c0_i32_0 = arith.constant 0 : i32
    return %arg1, %arg0, %c0_i32 : i32, i32, i32
  }
}

</mosaic_0001>

<llo_original>
// kernel: tpu_custom_call.1
$region0: #{tpu_custom_call.1}
  #allocation0 [shape = 'u32[]', space=smem, size = 0x4, offset = 0x4, fixed_abs, tag = 'smem constant byte address 0x4 - core index']
  #allocation1 [shape = 'u32[72,128]{1,0:T(1,128)}', space=vmem, size = 0x9000, scoped, tag = 'internal scratch']
  %s0 = inlined_call_operand.hbm [shape: f32[2,8,32], index: 0, kind: input, shape index: {}]
  %s1 = inlined_call_operand.hbm [shape: f32[8,32], index: 1, kind: input, shape index: {}]
  %s2 = inlined_call_operand.hbm [shape: f32[2,8,32], index: 2, kind: output, shape index: {}]
  %s3 = sld [smem:[#allocation0]]
  $region26: #{tpu_custom_call.1} parent=0
    _
  %s5 = ssub.s32 1, %s3
  %s6 = scalar_select 0, %s5, %s3
  $region1: #{tpu_custom_call.1} parent=0
    #allocation2 [shape = 'u8[8192]{0}', space=vmem, size = 0x2000, scoped, tag = 'input window, operand 0, single buffered']
    #allocation3 [shape = 's32[1]{0}', space=sflag, size = 0x4, scoped, tag = 'scoped memory for tpu_custom_call.1']
    #allocation4 [shape = 's32[1]{0}', space=sflag, size = 0x4, scoped, tag = 'scoped memory for tpu_custom_call.1']
    #allocation5 [shape = 'u8[4096]{0}', space=vmem, size = 0x1000, scoped, tag = 'input window, operand 1, single buffered']
    #allocation6 [shape = 's32[1]{0}', space=sflag, size = 0x4, scoped, tag = 'scoped memory for tpu_custom_call.1']
    #allocation7 [shape = 'u8[8192]{0}', space=vmem, size = 0x2000, scoped, tag = 'output window, operand 0, single buffered']
    %7 = vsyncpa [#allocation3], 0
    %8 = vsyncpa [#allocation6], 0
    %9 = vsyncpa [#allocation4], 0
    // Predicated region
    $region2: #{tpu_custom_call.1} parent=1 // pred_check
      _
    $region3: #{tpu_custom_call.1} parent=1 // pred_check_branch
      %11 = sbr.rel (0) target = $region5
    $region4: #{tpu_custom_call.1} parent=1 // pred_region
      %13 = vsyncadd [#allocation3], 0
      %s14 = sshll.u32 %s0, 4
      %s15 = int_to_ptr.hbm [resolvable:$true] %s14
      %s16 = sshll.u32 [#allocation2], 4
      %s17 = int_to_ptr.vmem [resolvable:$true] %s16
      %22 = dma.hbm_to_vmem [thread:$0]  %s15, 256, %s17, [#allocation3], 128, 128, 8
    $region5: #{tpu_custom_call.1} parent=1 // pred_fallthru
      _
    // Predicated region
    $region6: #{tpu_custom_call.1} parent=1 // pred_check
      _
    $region7: #{tpu_custom_call.1} parent=1 // pred_check_branch
      %24 = sbr.rel (0) target = $region9
    $region8: #{tpu_custom_call.1} parent=1 // pred_region
      %26 = vsyncadd [#allocation6], 0
      %s28 = sshll.u32 %s1, 4
      %s29 = int_to_ptr.hbm [resolvable:$true] %s28
      %s30 = sshll.u32 [#allocation5], 4
      %s31 = int_to_ptr.vmem [resolvable:$true] %s30
      %33 = dma.hbm_to_vmem [thread:$0]  %s29, 128, %s31, [#allocation6]
    $region9: #{tpu_custom_call.1} parent=1 // pred_fallthru
      _
    // Predicated region
    $region10: #{tpu_custom_call.1} parent=1 // pred_check
      _
    $region11: #{tpu_custom_call.1} parent=1 // pred_check_branch
      %35 = sbr.rel (0) target = $region13
    $region12: #{tpu_custom_call.1} parent=1 // pred_region
      %37 = dma.done [#allocation3], 256
    $region13: #{tpu_custom_call.1} parent=1 // pred_fallthru
      _
    // Predicated region
    $region14: #{tpu_custom_call.1} parent=1 // pred_check
      _
    $region15: #{tpu_custom_call.1} parent=1 // pred_check_branch
      %39 = sbr.rel (0) target = $region17
    $region16: #{tpu_custom_call.1} parent=1 // pred_region
      %41 = dma.done [#allocation6], 128
    $region17: #{tpu_custom_call.1} parent=1 // pred_fallthru
      _
    %v42 = vld [vmem:[#allocation2] sm:$0xff]
    %v43 = vld [vmem:[#allocation2 + $0x8] sm:$0xff]
    %v44 = vld [vmem:[#allocation5] sm:$0xff]
    %v45 = vadd.f32 %v42, %v44
    %v46 = vadd.f32 %v43, %v44
    %vm47 = vcmask 261120
    %48 = vst.msk [vmem:[#allocation7] sm:$0xff] %vm47, %v45
    %49 = vst.msk [vmem:[#allocation7 + $0x8] sm:$0xff] %vm47, %v46
    // Predicated region
    $region18: #{tpu_custom_call.1} parent=1 // pred_check
      _
    $region19: #{tpu_custom_call.1} parent=1 // pred_check_branch
      %51 = sbr.rel (0) target = $region21
    $region20: #{tpu_custom_call.1} parent=1 // pred_region
      %53 = vsyncadd [#allocation4], 0
      %s54 = sshll.u32 [#allocation7], 4
      %s55 = int_to_ptr.vmem [resolvable:$true] %s54
      %s56 = sshll.u32 %s2, 4
      %s57 = int_to_ptr.hbm [resolvable:$true] %s56
      %62 = dma.vmem_to_hbm [thread:$0]  %s55, 256, %s57, [#allocation4], 128, 128, 8
    $region21: #{tpu_custom_call.1} parent=1 // pred_fallthru
      _
    // Predicated region
    $region22: #{tpu_custom_call.1} parent=1 // pred_check
      _
    $region23: #{tpu_custom_call.1} parent=1 // pred_check_branch
      %64 = sbr.rel (0) target = $region25
    $region24: #{tpu_custom_call.1} parent=1 // pred_region
      %66 = dma.done [#allocation4], 256
    $region25: #{tpu_custom_call.1} parent=1 // pred_fallthru
      _
    %67 = vsyncpa [#allocation3], 1
    %68 = vsyncpa [#allocation6], 1
    %69 = vsyncpa [#allocation4], 1

</llo_original>
